<compile_context>
chip_gen: v5e
topology: v5e:2x2
jax: 0.10.0
libtpu: 0.0.40
codegen_flags: <defaults>
</compile_context>

<pallas_src>
import jax
import jax.numpy as jnp
from jax.experimental import pallas as pl
from jax.experimental.pallas import tpu as pltpu


def _head_kernel(x_ref, w_ref, b_ref, o_ref):
    """Fused AdaptiveAvgPool2d((1,1)) + View + Linear for one batch tile.

    x_ref: (tb, C, H*W)  activations, spatial flattened onto the lane axis
    w_ref: (C, N)        linear weight, pre-transposed to (in, out)
    b_ref: (1, N)        linear bias
    o_ref: (tb, N)       class scores
    """
    x = x_ref[...].astype(jnp.float32)                       # (tb, C, hw)
    # Spatial sum: cross-lane reduce on the XLU (free slot; kernel is DMA-bound).
    pooled = jnp.sum(x, axis=-1)                              # (tb, C)
    # Linear layer on the MXU.
    h = jnp.dot(pooled, w_ref[...].astype(jnp.float32),
                preferred_element_type=jnp.float32)           # (tb, N)
    # Fold the average-pool scale into the small (tb, N) result.
    inv_hw = 1.0 / float(x_ref.shape[-1])
    o_ref[...] = (h * inv_hw + b_ref[...].astype(jnp.float32)).astype(o_ref.dtype)


def _pick_batch_tile(B, C, hw, itemsize, vmem_budget_bytes=8 << 20):
    """Largest batch tile whose double-buffered input block fits the budget."""
    row_bytes = C * hw * itemsize
    tb = max(1, vmem_budget_bytes // (2 * row_bytes))
    return int(min(B, tb, 128))


def baseline_head_forward(x, weight, bias):
    """JAX/Pallas equivalent of BaselineTrain's final block.

    Args:
      x:      (B, C, H, W) feature map (C == linear input size, e.g. 512).
      weight: (num_class, C) linear weight (module zero-initializes it).
      bias:   (num_class,)   linear bias.

    Returns:
      (h, h) — matching Linear_Layer_Local_Loss.forward's output structure.
    """
    B, C, H, W = x.shape
    N = weight.shape[0]
    hw = H * W

    # Lane-dense view: spatial -> lanes (H*W is a multiple of 128 for the
    # usual 16x16 maps); pure reshape of the NCHW layout, no transpose.
    x3 = x.reshape(B, C, hw)
    w_t = weight.T                      # (C, N): ready for pooled @ w_t
    b2 = bias.reshape(1, N)

    tb = _pick_batch_tile(B, C, hw, x.dtype.itemsize)
    grid = (pl.cdiv(B, tb),)

    flops = B * C * hw + 2 * B * C * N + 2 * B * N
    bytes_accessed = (x3.size * x3.dtype.itemsize
                      + w_t.size * w_t.dtype.itemsize
                      + b2.size * b2.dtype.itemsize
                      + B * N * x.dtype.itemsize)

    scores = pl.pallas_call(
        _head_kernel,
        out_shape=jax.ShapeDtypeStruct((B, N), x.dtype),
        grid_spec=pltpu.PrefetchScalarGridSpec(
            num_scalar_prefetch=0,
            grid=grid,
            in_specs=[
                # Batch-tiled activations; trailing (C, H*W) dims are
                # (8,128)-aligned (512 % 8 == 0, 256 % 128 == 0).
                pl.BlockSpec((tb, C, hw), lambda i: (i, 0, 0)),
                # Weight / bias: full-extent blocks, resident every step.
                pl.BlockSpec((C, N), lambda i: (0, 0)),
                pl.BlockSpec((1, N), lambda i: (0, 0)),
            ],
            out_specs=pl.BlockSpec((tb, N), lambda i: (i, 0)),
        ),
        compiler_params=pltpu.CompilerParams(
            # Batch tiles are independent -> shard across v7x's two TCs.
            dimension_semantics=("parallel",),
        ),
        cost_estimate=pl.CostEstimate(
            flops=flops, transcendentals=0, bytes_accessed=bytes_accessed),
    )(x3, w_t, b2)

    # Linear_Layer_Local_Loss returns (h, h).
    return scores, scores


if __name__ == "__main__":
    key = jax.random.PRNGKey(0)
    kx, kb, kw = jax.random.split(key, 3)

    # Shapes implied by the module: 512-channel feature map into the head,
    # miniImageNet num_class = 64.  Small batch / spatial extent for the test.
    B, C, H, W = 2, 512, 16, 16
    num_class = 64

    x = jax.random.normal(kx, (B, C, H, W), dtype=jnp.float32)

    # Module init: weight zeroed, bias left at PyTorch's default
    # uniform(-1/sqrt(in), 1/sqrt(in)).
    weight_zero = jnp.zeros((num_class, C), dtype=jnp.float32)
    bound = 1.0 / float(C) ** 0.5
    bias = jax.random.uniform(kb, (num_class,), dtype=jnp.float32,
                              minval=-bound, maxval=bound)

    # --- run with the module's (zeroed) weights ---
    scores, h_local = baseline_head_forward(x, weight_zero, bias)
    jax.block_until_ready(scores)

    pooled_ref = x.mean(axis=(2, 3))
    ref = pooled_ref @ weight_zero.T + bias
    assert scores.shape == (B, num_class) and scores.dtype == x.dtype
    assert h_local is scores
    assert bool(jnp.allclose(scores, ref, atol=1e-5, rtol=1e-5)), \
        "head (zero-weight) mismatch"

    # --- exercise the matmul path with non-zero weights as well ---
    weight_rnd = jax.random.normal(kw, (num_class, C), dtype=jnp.float32) * 0.02
    scores2, _ = baseline_head_forward(x, weight_rnd, bias)
    jax.block_until_ready(scores2)
    ref2 = pooled_ref @ weight_rnd.T + bias
    assert bool(jnp.allclose(scores2, ref2, atol=1e-4, rtol=1e-4)), \
        "head (random-weight) mismatch"

    print("KERNEL_OK")
</pallas_src>

<mosaic_0001>
module attributes {stable_mosaic.version = 11 : i64} {
  func.func @_head_kernel(%arg0: i32, %arg1: memref<2x512x256xf32, #tpu.memory_space<vmem>>, %arg2: memref<512x64xf32, #tpu.memory_space<vmem>>, %arg3: memref<1x64xf32, #tpu.memory_space<vmem>>, %arg4: memref<2x64xf32, #tpu.memory_space<vmem>>) attributes {dimension_semantics = [#tpu.dimension_semantics<parallel>], iteration_bounds = array<i64: 1>, scalar_prefetch = 0 : i64, scratch_operands = 0 : i64, tpu.core_type = #tpu.core_type<tc>, window_params = [{transform_indices = @transform_0, window_bounds = array<i64: 2, 512, 256>}, {pipeline_mode = #tpu.pipeline_mode<synchronous>, transform_indices = @transform_1, window_bounds = array<i64: 512, 64>}, {pipeline_mode = #tpu.pipeline_mode<synchronous>, transform_indices = @transform_2, window_bounds = array<i64: 1, 64>}, {transform_indices = @transform_3, window_bounds = array<i64: 2, 64>}]} {
    %c0 = arith.constant 0 : index
    %c0_0 = arith.constant 0 : index
    %c0_1 = arith.constant 0 : index
    %0 = vector.load %arg1[%c0, %c0_0, %c0_1] : memref<2x512x256xf32, #tpu.memory_space<vmem>>, vector<2x512x256xf32>
    %cst = arith.constant dense<0.000000e+00> : vector<2x512xf32>
    %1 = vector.multi_reduction <add>, %0, %cst [2] : vector<2x512x256xf32> to vector<2x512xf32>
    %c0_2 = arith.constant 0 : index
    %c0_3 = arith.constant 0 : index
    %2 = vector.load %arg2[%c0_2, %c0_3] : memref<512x64xf32, #tpu.memory_space<vmem>>, vector<512x64xf32>
    %cst_4 = arith.constant dense<0.000000e+00> : vector<2x64xf32>
    %3 = tpu.matmul %1, %2, %cst_4 {dimension_numbers = #tpu.dot_dimension_numbers<[1], [0], [0], [1], [0, 0, 1, 1], [], []>} : vector<2x512xf32>, vector<512x64xf32>, vector<2x64xf32> -> vector<2x64xf32>
    %cst_5 = arith.constant 3.906250e-03 : f32
    %4 = vector.broadcast %cst_5 : f32 to vector<2x64xf32>
    %5 = arith.mulf %3, %4 : vector<2x64xf32>
    %c0_6 = arith.constant 0 : index
    %c0_7 = arith.constant 0 : index
    %6 = vector.load %arg3[%c0_6, %c0_7] : memref<1x64xf32, #tpu.memory_space<vmem>>, vector<1x64xf32>
    %7 = vector.broadcast %6 : vector<1x64xf32> to vector<2x64xf32>
    %8 = arith.addf %5, %7 : vector<2x64xf32>
    %c0_8 = arith.constant 0 : index
    %c0_9 = arith.constant 0 : index
    %9 = vector.load %arg4[%c0_8, %c0_9] : memref<2x64xf32, #tpu.memory_space<vmem>>, vector<2x64xf32>
    tpu.vector_store %arg4[%c0_8, %c0_9], %8 {strides = array<i32>} : memref<2x64xf32, #tpu.memory_space<vmem>>, vector<2x64xf32>,
    return
  }
  func.func @transform_0(%arg0: i32) -> (i32, i32, i32) {
    %c0_i32 = arith.constant 0 : i32
    %c0_i32_0 = arith.constant 0 : i32
    %c0_i32_1 = arith.constant 0 : i32
    return %arg0, %c0_i32, %c0_i32_0 : i32, i32, i32
  }
  func.func @transform_1(%arg0: i32) -> (i32, i32) {
    %c0_i32 = arith.constant 0 : i32
    %c0_i32_0 = arith.constant 0 : i32
    %c0_i32_1 = arith.constant 0 : i32
    return %c0_i32, %c0_i32_0 : i32, i32
  }
  func.func @transform_2(%arg0: i32) -> (i32, i32) {
    %c0_i32 = arith.constant 0 : i32
    %c0_i32_0 = arith.constant 0 : i32
    %c0_i32_1 = arith.constant 0 : i32
    return %c0_i32, %c0_i32_0 : i32, i32
  }
  func.func @transform_3(%arg0: i32) -> (i32, i32) {
    %c0_i32 = arith.constant 0 : i32
    %c0_i32_0 = arith.constant 0 : i32
    return %arg0, %c0_i32 : i32, i32
  }
}

</mosaic_0001>

<llo_original>
// kernel: tpu_custom_call.1
$region0: #{tpu_custom_call.1}
  #allocation0 [shape = 'u32[]', space=smem, size = 0x4, offset = 0x4, fixed_abs, tag = 'smem constant byte address 0x4 - core index']
  #allocation1 [shape = 'u32[72,128]{1,0:T(1,128)}', space=vmem, size = 0x9000, scoped, tag = 'internal scratch']
  %s0 = inlined_call_operand.hbm [shape: f32[2,512,256], index: 0, kind: input, shape index: {}]
  %s1 = inlined_call_operand.vmem [shape: f32[512,64], index: 1, kind: input, shape index: {}]
  %s2 = inlined_call_operand.vmem [shape: f32[1,64], index: 2, kind: input, shape index: {}]
  %s3 = inlined_call_operand.hbm [shape: f32[2,64], index: 3, kind: output, shape index: {}]
  %s4 = sld [smem:[#allocation0]]
  $region26: #{tpu_custom_call.1} parent=0
    _
  %s6 = ssub.s32 1, %s4
  %s7 = scalar_select 0, %s6, %s4
  $region1: #{tpu_custom_call.1} parent=0
    #allocation2 [shape = 'u8[1048576]{0}', space=vmem, size = 0x100000, scoped, tag = 'input window, operand 0, single buffered']
    #allocation3 [shape = 's32[1]{0}', space=sflag, size = 0x4, scoped, tag = 'scoped memory for tpu_custom_call.1']
    #allocation4 [shape = 's32[1]{0}', space=sflag, size = 0x4, scoped, tag = 'scoped memory for tpu_custom_call.1']
    #allocation5 [shape = 'u8[1024]{0}', space=vmem, size = 0x400, scoped, tag = 'output window, operand 0, single buffered']
    %8 = vsyncpa [#allocation3], 0
    %9 = vsyncpa [#allocation4], 0
    // Predicated region
    $region2: #{tpu_custom_call.1} parent=1 // pred_check
      _
    $region3: #{tpu_custom_call.1} parent=1 // pred_check_branch
      %11 = sbr.rel (0) target = $region5
    $region4: #{tpu_custom_call.1} parent=1 // pred_region
      %13 = vsyncadd [#allocation3], 0
      %s14 = sshll.u32 %s0, 4
      %s15 = int_to_ptr.hbm [resolvable:$true] %s14
      %s16 = sshll.u32 [#allocation2], 4
      %s17 = int_to_ptr.vmem [resolvable:$true] %s16
      %22 = dma.hbm_to_vmem [thread:$0]  %s15, 32768, %s17, [#allocation3], 256, 256, 16
    $region5: #{tpu_custom_call.1} parent=1 // pred_fallthru
      _
    // Predicated region
    $region6: #{tpu_custom_call.1} parent=1 // pred_check
      _
    $region7: #{tpu_custom_call.1} parent=1 // pred_check_branch
      %24 = sbr.rel (0) target = $region9
    $region8: #{tpu_custom_call.1} parent=1 // pred_region
      _
    $region9: #{tpu_custom_call.1} parent=1 // pred_fallthru
      _
    // Predicated region
    $region10: #{tpu_custom_call.1} parent=1 // pred_check
      _
    $region11: #{tpu_custom_call.1} parent=1 // pred_check_branch
      %26 = sbr.rel (0) target = $region13
    $region12: #{tpu_custom_call.1} parent=1 // pred_region
      _
    $region13: #{tpu_custom_call.1} parent=1 // pred_fallthru
      _
    // Predicated region
    $region14: #{tpu_custom_call.1} parent=1 // pred_check
      _
    $region15: #{tpu_custom_call.1} parent=1 // pred_check_branch
      %28 = sbr.rel (0) target = $region17
    $region16: #{tpu_custom_call.1} parent=1 // pred_region
      %30 = dma.done [#allocation3], 32768
    $region17: #{tpu_custom_call.1} parent=1 // pred_fallthru
      _
    %v31 = vld [vmem:[#allocation2] sm:$0xff]
    %v32 = vld [vmem:[#allocation2 + $0x8] sm:$0xff]
    %v33 = vld [vmem:[#allocation2 + $0x10] sm:$0xff]
    %v34 = vld [vmem:[#allocation2 + $0x18] sm:$0xff]
    %v35 = vld [vmem:[#allocation2 + $0x20] sm:$0xff]
    %v36 = vld [vmem:[#allocation2 + $0x28] sm:$0xff]
    %v37 = vld [vmem:[#allocation2 + $0x30] sm:$0xff]
    %v38 = vld [vmem:[#allocation2 + $0x38] sm:$0xff]
    %v39 = vld [vmem:[#allocation2 + $0x40] sm:$0xff]
    %v40 = vld [vmem:[#allocation2 + $0x48] sm:$0xff]
    %v41 = vld [vmem:[#allocation2 + $0x50] sm:$0xff]
    %v42 = vld [vmem:[#allocation2 + $0x58] sm:$0xff]
    %v43 = vld [vmem:[#allocation2 + $0x60] sm:$0xff]
    %v44 = vld [vmem:[#allocation2 + $0x68] sm:$0xff]
    %v45 = vld [vmem:[#allocation2 + $0x70] sm:$0xff]
    %v46 = vld [vmem:[#allocation2 + $0x78] sm:$0xff]
    %v47 = vld [vmem:[#allocation2 + $0x80] sm:$0xff]
    %v48 = vld [vmem:[#allocation2 + $0x88] sm:$0xff]
    %v49 = vld [vmem:[#allocation2 + $0x90] sm:$0xff]
    %v50 = vld [vmem:[#allocation2 + $0x98] sm:$0xff]
    %v51 = vld [vmem:[#allocation2 + $0xa0] sm:$0xff]
    %v52 = vld [vmem:[#allocation2 + $0xa8] sm:$0xff]
    %v53 = vld [vmem:[#allocation2 + $0xb0] sm:$0xff]
    %v54 = vld [vmem:[#allocation2 + $0xb8] sm:$0xff]
    %v55 = vld [vmem:[#allocation2 + $0xc0] sm:$0xff]
    %v56 = vld [vmem:[#allocation2 + $0xc8] sm:$0xff]
    %v57 = vld [vmem:[#allocation2 + $0xd0] sm:$0xff]
    %v58 = vld [vmem:[#allocation2 + $0xd8] sm:$0xff]
    %v59 = vld [vmem:[#allocation2 + $0xe0] sm:$0xff]
    %v60 = vld [vmem:[#allocation2 + $0xe8] sm:$0xff]
    %v61 = vld [vmem:[#allocation2 + $0xf0] sm:$0xff]
    %v62 = vld [vmem:[#allocation2 + $0xf8] sm:$0xff]
    %v63 = vld [vmem:[#allocation2 + $0x100] sm:$0xff]
    %v64 = vld [vmem:[#allocation2 + $0x108] sm:$0xff]
    %v65 = vld [vmem:[#allocation2 + $0x110] sm:$0xff]
    %v66 = vld [vmem:[#allocation2 + $0x118] sm:$0xff]
    %v67 = vld [vmem:[#allocation2 + $0x120] sm:$0xff]
    %v68 = vld [vmem:[#allocation2 + $0x128] sm:$0xff]
    %v69 = vld [vmem:[#allocation2 + $0x130] sm:$0xff]
    %v70 = vld [vmem:[#allocation2 + $0x138] sm:$0xff]
    %v71 = vld [vmem:[#allocation2 + $0x140] sm:$0xff]
    %v72 = vld [vmem:[#allocation2 + $0x148] sm:$0xff]
    %v73 = vld [vmem:[#allocation2 + $0x150] sm:$0xff]
    %v74 = vld [vmem:[#allocation2 + $0x158] sm:$0xff]
    %v75 = vld [vmem:[#allocation2 + $0x160] sm:$0xff]
    %v76 = vld [vmem:[#allocation2 + $0x168] sm:$0xff]
    %v77 = vld [vmem:[#allocation2 + $0x170] sm:$0xff]
    %v78 = vld [vmem:[#allocation2 + $0x178] sm:$0xff]
    %v79 = vld [vmem:[#allocation2 + $0x180] sm:$0xff]
    %v80 = vld [vmem:[#allocation2 + $0x188] sm:$0xff]
    %v81 = vld [vmem:[#allocation2 + $0x190] sm:$0xff]
    %v82 = vld [vmem:[#allocation2 + $0x198] sm:$0xff]
    %v83 = vld [vmem:[#allocation2 + $0x1a0] sm:$0xff]
    %v84 = vld [vmem:[#allocation2 + $0x1a8] sm:$0xff]
    %v85 = vld [vmem:[#allocation2 + $0x1b0] sm:$0xff]
    %v86 = vld [vmem:[#allocation2 + $0x1b8] sm:$0xff]
    %v87 = vld [vmem:[#allocation2 + $0x1c0] sm:$0xff]
    %v88 = vld [vmem:[#allocation2 + $0x1c8] sm:$0xff]
    %v89 = vld [vmem:[#allocation2 + $0x1d0] sm:$0xff]
    %v90 = vld [vmem:[#allocation2 + $0x1d8] sm:$0xff]
    %v91 = vld [vmem:[#allocation2 + $0x1e0] sm:$0xff]
    %v92 = vld [vmem:[#allocation2 + $0x1e8] sm:$0xff]
    %v93 = vld [vmem:[#allocation2 + $0x1f0] sm:$0xff]
    %v94 = vld [vmem:[#allocation2 + $0x1f8] sm:$0xff]
    %v95 = vld [vmem:[#allocation2 + $0x200] sm:$0xff]
    %v96 = vld [vmem:[#allocation2 + $0x208] sm:$0xff]
    %v97 = vld [vmem:[#allocation2 + $0x210] sm:$0xff]
    %v98 = vld [vmem:[#allocation2 + $0x218] sm:$0xff]
    %v99 = vld [vmem:[#allocation2 + $0x220] sm:$0xff]
    %v100 = vld [vmem:[#allocation2 + $0x228] sm:$0xff]
    %v101 = vld [vmem:[#allocation2 + $0x230] sm:$0xff]
    %v102 = vld [vmem:[#allocation2 + $0x238] sm:$0xff]
    %v103 = vld [vmem:[#allocation2 + $0x240] sm:$0xff]
    %v104 = vld [vmem:[#allocation2 + $0x248] sm:$0xff]
    %v105 = vld [vmem:[#allocation2 + $0x250] sm:$0xff]
    %v106 = vld [vmem:[#allocation2 + $0x258] sm:$0xff]
    %v107 = vld [vmem:[#allocation2 + $0x260] sm:$0xff]
    %v108 = vld [vmem:[#allocation2 + $0x268] sm:$0xff]
    %v109 = vld [vmem:[#allocation2 + $0x270] sm:$0xff]
    %v110 = vld [vmem:[#allocation2 + $0x278] sm:$0xff]
    %v111 = vld [vmem:[#allocation2 + $0x280] sm:$0xff]
    %v112 = vld [vmem:[#allocation2 + $0x288] sm:$0xff]
    %v113 = vld [vmem:[#allocation2 + $0x290] sm:$0xff]
    %v114 = vld [vmem:[#allocation2 + $0x298] sm:$0xff]
    %v115 = vld [vmem:[#allocation2 + $0x2a0] sm:$0xff]
    %v116 = vld [vmem:[#allocation2 + $0x2a8] sm:$0xff]
    %v117 = vld [vmem:[#allocation2 + $0x2b0] sm:$0xff]
    %v118 = vld [vmem:[#allocation2 + $0x2b8] sm:$0xff]
    %v119 = vld [vmem:[#allocation2 + $0x2c0] sm:$0xff]
    %v120 = vld [vmem:[#allocation2 + $0x2c8] sm:$0xff]
    %v121 = vld [vmem:[#allocation2 + $0x2d0] sm:$0xff]
    %v122 = vld [vmem:[#allocation2 + $0x2d8] sm:$0xff]
    %v123 = vld [vmem:[#allocation2 + $0x2e0] sm:$0xff]
    %v124 = vld [vmem:[#allocation2 + $0x2e8] sm:$0xff]
    %v125 = vld [vmem:[#allocation2 + $0x2f0] sm:$0xff]
    %v126 = vld [vmem:[#allocation2 + $0x2f8] sm:$0xff]
    %v127 = vld [vmem:[#allocation2 + $0x300] sm:$0xff]
    %v128 = vld [vmem:[#allocation2 + $0x308] sm:$0xff]
    %v129 = vld [vmem:[#allocation2 + $0x310] sm:$0xff]
    %v130 = vld [vmem:[#allocation2 + $0x318] sm:$0xff]
    %v131 = vld [vmem:[#allocation2 + $0x320] sm:$0xff]
    %v132 = vld [vmem:[#allocation2 + $0x328] sm:$0xff]
    %v133 = vld [vmem:[#allocation2 + $0x330] sm:$0xff]
    %v134 = vld [vmem:[#allocation2 + $0x338] sm:$0xff]
    %v135 = vld [vmem:[#allocation2 + $0x340] sm:$0xff]
    %v136 = vld [vmem:[#allocation2 + $0x348] sm:$0xff]
    %v137 = vld [vmem:[#allocation2 + $0x350] sm:$0xff]
    %v138 = vld [vmem:[#allocation2 + $0x358] sm:$0xff]
    %v139 = vld [vmem:[#allocation2 + $0x360] sm:$0xff]
    %v140 = vld [vmem:[#allocation2 + $0x368] sm:$0xff]
    %v141 = vld [vmem:[#allocation2 + $0x370] sm:$0xff]
    %v142 = vld [vmem:[#allocation2 + $0x378] sm:$0xff]
    %v143 = vld [vmem:[#allocation2 + $0x380] sm:$0xff]
    %v144 = vld [vmem:[#allocation2 + $0x388] sm:$0xff]
    %v145 = vld [vmem:[#allocation2 + $0x390] sm:$0xff]
    %v146 = vld [vmem:[#allocation2 + $0x398] sm:$0xff]
    %v147 = vld [vmem:[#allocation2 + $0x3a0] sm:$0xff]
    %v148 = vld [vmem:[#allocation2 + $0x3a8] sm:$0xff]
    %v149 = vld [vmem:[#allocation2 + $0x3b0] sm:$0xff]
    %v150 = vld [vmem:[#allocation2 + $0x3b8] sm:$0xff]
    %v151 = vld [vmem:[#allocation2 + $0x3c0] sm:$0xff]
    %v152 = vld [vmem:[#allocation2 + $0x3c8] sm:$0xff]
    %v153 = vld [vmem:[#allocation2 + $0x3d0] sm:$0xff]
    %v154 = vld [vmem:[#allocation2 + $0x3d8] sm:$0xff]
    %v155 = vld [vmem:[#allocation2 + $0x3e0] sm:$0xff]
    %v156 = vld [vmem:[#allocation2 + $0x3e8] sm:$0xff]
    %v157 = vld [vmem:[#allocation2 + $0x3f0] sm:$0xff]
    %v158 = vld [vmem:[#allocation2 + $0x3f8] sm:$0xff]
    %v159 = vld [vmem:[#allocation2 + $0x400] sm:$0xff]
    %v160 = vld [vmem:[#allocation2 + $0x408] sm:$0xff]
    %v161 = vld [vmem:[#allocation2 + $0x410] sm:$0xff]
    %v162 = vld [vmem:[#allocation2 + $0x418] sm:$0xff]
    %v163 = vld [vmem:[#allocation2 + $0x420] sm:$0xff]
    %v164 = vld [vmem:[#allocation2 + $0x428] sm:$0xff]
    %v165 = vld [vmem:[#allocation2 + $0x430] sm:$0xff]
    %v166 = vld [vmem:[#allocation2 + $0x438] sm:$0xff]
    %v167 = vld [vmem:[#allocation2 + $0x440] sm:$0xff]
    %v168 = vld [vmem:[#allocation2 + $0x448] sm:$0xff]
    %v169 = vld [vmem:[#allocation2 + $0x450] sm:$0xff]
    %v170 = vld [vmem:[#allocation2 + $0x458] sm:$0xff]
    %v171 = vld [vmem:[#allocation2 + $0x460] sm:$0xff]
    %v172 = vld [vmem:[#allocation2 + $0x468] sm:$0xff]
    %v173 = vld [vmem:[#allocation2 + $0x470] sm:$0xff]
    %v174 = vld [vmem:[#allocation2 + $0x478] sm:$0xff]
    %v175 = vld [vmem:[#allocation2 + $0x480] sm:$0xff]
    %v176 = vld [vmem:[#allocation2 + $0x488] sm:$0xff]
    %v177 = vld [vmem:[#allocation2 + $0x490] sm:$0xff]
    %v178 = vld [vmem:[#allocation2 + $0x498] sm:$0xff]
    %v179 = vld [vmem:[#allocation2 + $0x4a0] sm:$0xff]
    %v180 = vld [vmem:[#allocation2 + $0x4a8] sm:$0xff]
    %v181 = vld [vmem:[#allocation2 + $0x4b0] sm:$0xff]
    %v182 = vld [vmem:[#allocation2 + $0x4b8] sm:$0xff]
    %v183 = vld [vmem:[#allocation2 + $0x4c0] sm:$0xff]
    %v184 = vld [vmem:[#allocation2 + $0x4c8] sm:$0xff]
    %v185 = vld [vmem:[#allocation2 + $0x4d0] sm:$0xff]
    %v186 = vld [vmem:[#allocation2 + $0x4d8] sm:$0xff]
    %v187 = vld [vmem:[#allocation2 + $0x4e0] sm:$0xff]
    %v188 = vld [vmem:[#allocation2 + $0x4e8] sm:$0xff]
    %v189 = vld [vmem:[#allocation2 + $0x4f0] sm:$0xff]
    %v190 = vld [vmem:[#allocation2 + $0x4f8] sm:$0xff]
    %v191 = vld [vmem:[#allocation2 + $0x500] sm:$0xff]
    %v192 = vld [vmem:[#allocation2 + $0x508] sm:$0xff]
    %v193 = vld [vmem:[#allocation2 + $0x510] sm:$0xff]
    %v194 = vld [vmem:[#allocation2 + $0x518] sm:$0xff]
    %v195 = vld [vmem:[#allocation2 + $0x520] sm:$0xff]
    %v196 = vld [vmem:[#allocation2 + $0x528] sm:$0xff]
    %v197 = vld [vmem:[#allocation2 + $0x530] sm:$0xff]
    %v198 = vld [vmem:[#allocation2 + $0x538] sm:$0xff]
    %v199 = vld [vmem:[#allocation2 + $0x540] sm:$0xff]
    %v200 = vld [vmem:[#allocation2 + $0x548] sm:$0xff]
    %v201 = vld [vmem:[#allocation2 + $0x550] sm:$0xff]
    %v202 = vld [vmem:[#allocation2 + $0x558] sm:$0xff]
    %v203 = vld [vmem:[#allocation2 + $0x560] sm:$0xff]
    %v204 = vld [vmem:[#allocation2 + $0x568] sm:$0xff]
    %v205 = vld [vmem:[#allocation2 + $0x570] sm:$0xff]
    %v206 = vld [vmem:[#allocation2 + $0x578] sm:$0xff]
    %v207 = vld [vmem:[#allocation2 + $0x580] sm:$0xff]
    %v208 = vld [vmem:[#allocation2 + $0x588] sm:$0xff]
    %v209 = vld [vmem:[#allocation2 + $0x590] sm:$0xff]
    %v210 = vld [vmem:[#allocation2 + $0x598] sm:$0xff]
    %v211 = vld [vmem:[#allocation2 + $0x5a0] sm:$0xff]
    %v212 = vld [vmem:[#allocation2 + $0x5a8] sm:$0xff]
    %v213 = vld [vmem:[#allocation2 + $0x5b0] sm:$0xff]
    %v214 = vld [vmem:[#allocation2 + $0x5b8] sm:$0xff]
    %v215 = vld [vmem:[#allocation2 + $0x5c0] sm:$0xff]
    %v216 = vld [vmem:[#allocation2 + $0x5c8] sm:$0xff]
    %v217 = vld [vmem:[#allocation2 + $0x5d0] sm:$0xff]
    %v218 = vld [vmem:[#allocation2 + $0x5d8] sm:$0xff]
    %v219 = vld [vmem:[#allocation2 + $0x5e0] sm:$0xff]
    %v220 = vld [vmem:[#allocation2 + $0x5e8] sm:$0xff]
    %v221 = vld [vmem:[#allocation2 + $0x5f0] sm:$0xff]
    %v222 = vld [vmem:[#allocation2 + $0x5f8] sm:$0xff]
    %v223 = vld [vmem:[#allocation2 + $0x600] sm:$0xff]
    %v224 = vld [vmem:[#allocation2 + $0x608] sm:$0xff]
    %v225 = vld [vmem:[#allocation2 + $0x610] sm:$0xff]
    %v226 = vld [vmem:[#allocation2 + $0x618] sm:$0xff]
    %v227 = vld [vmem:[#allocation2 + $0x620] sm:$0xff]
    %v228 = vld [vmem:[#allocation2 + $0x628] sm:$0xff]
    %v229 = vld [vmem:[#allocation2 + $0x630] sm:$0xff]
    %v230 = vld [vmem:[#allocation2 + $0x638] sm:$0xff]
    %v231 = vld [vmem:[#allocation2 + $0x640] sm:$0xff]
    %v232 = vld [vmem:[#allocation2 + $0x648] sm:$0xff]
    %v233 = vld [vmem:[#allocation2 + $0x650] sm:$0xff]
    %v234 = vld [vmem:[#allocation2 + $0x658] sm:$0xff]
    %v235 = vld [vmem:[#allocation2 + $0x660] sm:$0xff]
    %v236 = vld [vmem:[#allocation2 + $0x668] sm:$0xff]
    %v237 = vld [vmem:[#allocation2 + $0x670] sm:$0xff]
    %v238 = vld [vmem:[#allocation2 + $0x678] sm:$0xff]
    %v239 = vld [vmem:[#allocation2 + $0x680] sm:$0xff]
    %v240 = vld [vmem:[#allocation2 + $0x688] sm:$0xff]
    %v241 = vld [vmem:[#allocation2 + $0x690] sm:$0xff]
    %v242 = vld [vmem:[#allocation2 + $0x698] sm:$0xff]
    %v243 = vld [vmem:[#allocation2 + $0x6a0] sm:$0xff]
    %v244 = vld [vmem:[#allocation2 + $0x6a8] sm:$0xff]
    %v245 = vld [vmem:[#allocation2 + $0x6b0] sm:$0xff]
    %v246 = vld [vmem:[#allocation2 + $0x6b8] sm:$0xff]
    %v247 = vld [vmem:[#allocation2 + $0x6c0] sm:$0xff]
    %v248 = vld [vmem:[#allocation2 + $0x6c8] sm:$0xff]
    %v249 = vld [vmem:[#allocation2 + $0x6d0] sm:$0xff]
    %v250 = vld [vmem:[#allocation2 + $0x6d8] sm:$0xff]
    %v251 = vld [vmem:[#allocation2 + $0x6e0] sm:$0xff]
    %v252 = vld [vmem:[#allocation2 + $0x6e8] sm:$0xff]
    %v253 = vld [vmem:[#allocation2 + $0x6f0] sm:$0xff]
    %v254 = vld [vmem:[#allocation2 + $0x6f8] sm:$0xff]
    %v255 = vld [vmem:[#allocation2 + $0x700] sm:$0xff]
    %v256 = vld [vmem:[#allocation2 + $0x708] sm:$0xff]
    %v257 = vld [vmem:[#allocation2 + $0x710] sm:$0xff]
    %v258 = vld [vmem:[#allocation2 + $0x718] sm:$0xff]
    %v259 = vld [vmem:[#allocation2 + $0x720] sm:$0xff]
    %v260 = vld [vmem:[#allocation2 + $0x728] sm:$0xff]
    %v261 = vld [vmem:[#allocation2 + $0x730] sm:$0xff]
    %v262 = vld [vmem:[#allocation2 + $0x738] sm:$0xff]
    %v263 = vld [vmem:[#allocation2 + $0x740] sm:$0xff]
    %v264 = vld [vmem:[#allocation2 + $0x748] sm:$0xff]
    %v265 = vld [vmem:[#allocation2 + $0x750] sm:$0xff]
    %v266 = vld [vmem:[#allocation2 + $0x758] sm:$0xff]
    %v267 = vld [vmem:[#allocation2 + $0x760] sm:$0xff]
    %v268 = vld [vmem:[#allocation2 + $0x768] sm:$0xff]
    %v269 = vld [vmem:[#allocation2 + $0x770] sm:$0xff]
    %v270 = vld [vmem:[#allocation2 + $0x778] sm:$0xff]
    %v271 = vld [vmem:[#allocation2 + $0x780] sm:$0xff]
    %v272 = vld [vmem:[#allocation2 + $0x788] sm:$0xff]
    %v273 = vld [vmem:[#allocation2 + $0x790] sm:$0xff]
    %v274 = vld [vmem:[#allocation2 + $0x798] sm:$0xff]
    %v275 = vld [vmem:[#allocation2 + $0x7a0] sm:$0xff]
    %v276 = vld [vmem:[#allocation2 + $0x7a8] sm:$0xff]
    %v277 = vld [vmem:[#allocation2 + $0x7b0] sm:$0xff]
    %v278 = vld [vmem:[#allocation2 + $0x7b8] sm:$0xff]
    %v279 = vld [vmem:[#allocation2 + $0x7c0] sm:$0xff]
    %v280 = vld [vmem:[#allocation2 + $0x7c8] sm:$0xff]
    %v281 = vld [vmem:[#allocation2 + $0x7d0] sm:$0xff]
    %v282 = vld [vmem:[#allocation2 + $0x7d8] sm:$0xff]
    %v283 = vld [vmem:[#allocation2 + $0x7e0] sm:$0xff]
    %v284 = vld [vmem:[#allocation2 + $0x7e8] sm:$0xff]
    %v285 = vld [vmem:[#allocation2 + $0x7f0] sm:$0xff]
    %v286 = vld [vmem:[#allocation2 + $0x7f8] sm:$0xff]
    %v287 = vadd.f32 %v31, %v32
    %288 = vadd.xlane.f32.xlu0 %v287
    %v289 = vpop.xlane.xlu0 %288
    %v290 = vadd.f32 %v33, %v34
    %291 = vadd.xlane.f32.xlu0 %v290
    %v292 = vpop.xlane.xlu0 %291
    %v293 = vadd.f32 %v35, %v36
    %294 = vadd.xlane.f32.xlu0 %v293
    %v295 = vpop.xlane.xlu0 %294
    %v296 = vadd.f32 %v37, %v38
    %297 = vadd.xlane.f32.xlu0 %v296
    %v298 = vpop.xlane.xlu0 %297
    %v299 = vadd.f32 %v39, %v40
    %300 = vadd.xlane.f32.xlu0 %v299
    %v301 = vpop.xlane.xlu0 %300
    %v302 = vadd.f32 %v41, %v42
    %303 = vadd.xlane.f32.xlu0 %v302
    %v304 = vpop.xlane.xlu0 %303
    %v305 = vadd.f32 %v43, %v44
    %306 = vadd.xlane.f32.xlu0 %v305
    %v307 = vpop.xlane.xlu0 %306
    %v308 = vadd.f32 %v45, %v46
    %309 = vadd.xlane.f32.xlu0 %v308
    %v310 = vpop.xlane.xlu0 %309
    %v311 = vadd.f32 %v47, %v48
    %312 = vadd.xlane.f32.xlu0 %v311
    %v313 = vpop.xlane.xlu0 %312
    %v314 = vadd.f32 %v49, %v50
    %315 = vadd.xlane.f32.xlu0 %v314
    %v316 = vpop.xlane.xlu0 %315
    %v317 = vadd.f32 %v51, %v52
    %318 = vadd.xlane.f32.xlu0 %v317
    %v319 = vpop.xlane.xlu0 %318
    %v320 = vadd.f32 %v53, %v54
    %321 = vadd.xlane.f32.xlu0 %v320
    %v322 = vpop.xlane.xlu0 %321
    %v323 = vadd.f32 %v55, %v56
    %324 = vadd.xlane.f32.xlu0 %v323
    %v325 = vpop.xlane.xlu0 %324
    %v326 = vadd.f32 %v57, %v58
    %327 = vadd.xlane.f32.xlu0 %v326
    %v328 = vpop.xlane.xlu0 %327
    %v329 = vadd.f32 %v59, %v60
    %330 = vadd.xlane.f32.xlu0 %v329
    %v331 = vpop.xlane.xlu0 %330
    %v332 = vadd.f32 %v61, %v62
    %333 = vadd.xlane.f32.xlu0 %v332
    %v334 = vpop.xlane.xlu0 %333
    %v335 = vadd.f32 %v63, %v64
    %336 = vadd.xlane.f32.xlu0 %v335
    %v337 = vpop.xlane.xlu0 %336
    %v338 = vadd.f32 %v65, %v66
    %339 = vadd.xlane.f32.xlu0 %v338
    %v340 = vpop.xlane.xlu0 %339
    %v341 = vadd.f32 %v67, %v68
    %342 = vadd.xlane.f32.xlu0 %v341
    %v343 = vpop.xlane.xlu0 %342
    %v344 = vadd.f32 %v69, %v70
    %345 = vadd.xlane.f32.xlu0 %v344
    %v346 = vpop.xlane.xlu0 %345
    %v347 = vadd.f32 %v71, %v72
    %348 = vadd.xlane.f32.xlu0 %v347
    %v349 = vpop.xlane.xlu0 %348
    %v350 = vadd.f32 %v73, %v74
    %351 = vadd.xlane.f32.xlu0 %v350
    %v352 = vpop.xlane.xlu0 %351
    %v353 = vadd.f32 %v75, %v76
    %354 = vadd.xlane.f32.xlu0 %v353
    %v355 = vpop.xlane.xlu0 %354
    %v356 = vadd.f32 %v77, %v78
    %357 = vadd.xlane.f32.xlu0 %v356
    %v358 = vpop.xlane.xlu0 %357
    %v359 = vadd.f32 %v79, %v80
    %360 = vadd.xlane.f32.xlu0 %v359
    %v361 = vpop.xlane.xlu0 %360
    %v362 = vadd.f32 %v81, %v82
    %363 = vadd.xlane.f32.xlu0 %v362
    %v364 = vpop.xlane.xlu0 %363
    %v365 = vadd.f32 %v83, %v84
    %366 = vadd.xlane.f32.xlu0 %v365
    %v367 = vpop.xlane.xlu0 %366
    %v368 = vadd.f32 %v85, %v86
    %369 = vadd.xlane.f32.xlu0 %v368
    %v370 = vpop.xlane.xlu0 %369
    %v371 = vadd.f32 %v87, %v88
    %372 = vadd.xlane.f32.xlu0 %v371
    %v373 = vpop.xlane.xlu0 %372
    %v374 = vadd.f32 %v89, %v90
    %375 = vadd.xlane.f32.xlu0 %v374
    %v376 = vpop.xlane.xlu0 %375
    %v377 = vadd.f32 %v91, %v92
    %378 = vadd.xlane.f32.xlu0 %v377
    %v379 = vpop.xlane.xlu0 %378
    %v380 = vadd.f32 %v93, %v94
    %381 = vadd.xlane.f32.xlu0 %v380
    %v382 = vpop.xlane.xlu0 %381
    %v383 = vadd.f32 %v95, %v96
    %384 = vadd.xlane.f32.xlu0 %v383
    %v385 = vpop.xlane.xlu0 %384
    %v386 = vadd.f32 %v97, %v98
    %387 = vadd.xlane.f32.xlu0 %v386
    %v388 = vpop.xlane.xlu0 %387
    %v389 = vadd.f32 %v99, %v100
    %390 = vadd.xlane.f32.xlu0 %v389
    %v391 = vpop.xlane.xlu0 %390
    %v392 = vadd.f32 %v101, %v102
    %393 = vadd.xlane.f32.xlu0 %v392
    %v394 = vpop.xlane.xlu0 %393
    %v395 = vadd.f32 %v103, %v104
    %396 = vadd.xlane.f32.xlu0 %v395
    %v397 = vpop.xlane.xlu0 %396
    %v398 = vadd.f32 %v105, %v106
    %399 = vadd.xlane.f32.xlu0 %v398
    %v400 = vpop.xlane.xlu0 %399
    %v401 = vadd.f32 %v107, %v108
    %402 = vadd.xlane.f32.xlu0 %v401
    %v403 = vpop.xlane.xlu0 %402
    %v404 = vadd.f32 %v109, %v110
    %405 = vadd.xlane.f32.xlu0 %v404
    %v406 = vpop.xlane.xlu0 %405
    %v407 = vadd.f32 %v111, %v112
    %408 = vadd.xlane.f32.xlu0 %v407
    %v409 = vpop.xlane.xlu0 %408
    %v410 = vadd.f32 %v113, %v114
    %411 = vadd.xlane.f32.xlu0 %v410
    %v412 = vpop.xlane.xlu0 %411
    %v413 = vadd.f32 %v115, %v116
    %414 = vadd.xlane.f32.xlu0 %v413
    %v415 = vpop.xlane.xlu0 %414
    %v416 = vadd.f32 %v117, %v118
    %417 = vadd.xlane.f32.xlu0 %v416
    %v418 = vpop.xlane.xlu0 %417
    %v419 = vadd.f32 %v119, %v120
    %420 = vadd.xlane.f32.xlu0 %v419
    %v421 = vpop.xlane.xlu0 %420
    %v422 = vadd.f32 %v121, %v122
    %423 = vadd.xlane.f32.xlu0 %v422
    %v424 = vpop.xlane.xlu0 %423
    %v425 = vadd.f32 %v123, %v124
    %426 = vadd.xlane.f32.xlu0 %v425
    %v427 = vpop.xlane.xlu0 %426
    %v428 = vadd.f32 %v125, %v126
    %429 = vadd.xlane.f32.xlu0 %v428
    %v430 = vpop.xlane.xlu0 %429
    %v431 = vadd.f32 %v127, %v128
    %432 = vadd.xlane.f32.xlu0 %v431
    %v433 = vpop.xlane.xlu0 %432
    %v434 = vadd.f32 %v129, %v130
    %435 = vadd.xlane.f32.xlu0 %v434
    %v436 = vpop.xlane.xlu0 %435
    %v437 = vadd.f32 %v131, %v132
    %438 = vadd.xlane.f32.xlu0 %v437
    %v439 = vpop.xlane.xlu0 %438
    %v440 = vadd.f32 %v133, %v134
    %441 = vadd.xlane.f32.xlu0 %v440
    %v442 = vpop.xlane.xlu0 %441
    %v443 = vadd.f32 %v135, %v136
    %444 = vadd.xlane.f32.xlu0 %v443
    %v445 = vpop.xlane.xlu0 %444
    %v446 = vadd.f32 %v137, %v138
    %447 = vadd.xlane.f32.xlu0 %v446
    %v448 = vpop.xlane.xlu0 %447
    %v449 = vadd.f32 %v139, %v140
    %450 = vadd.xlane.f32.xlu0 %v449
    %v451 = vpop.xlane.xlu0 %450
    %v452 = vadd.f32 %v141, %v142
    %453 = vadd.xlane.f32.xlu0 %v452
    %v454 = vpop.xlane.xlu0 %453
    %v455 = vadd.f32 %v143, %v144
    %456 = vadd.xlane.f32.xlu0 %v455
    %v457 = vpop.xlane.xlu0 %456
    %v458 = vadd.f32 %v145, %v146
    %459 = vadd.xlane.f32.xlu0 %v458
    %v460 = vpop.xlane.xlu0 %459
    %v461 = vadd.f32 %v147, %v148
    %462 = vadd.xlane.f32.xlu0 %v461
    %v463 = vpop.xlane.xlu0 %462
    %v464 = vadd.f32 %v149, %v150
    %465 = vadd.xlane.f32.xlu0 %v464
    %v466 = vpop.xlane.xlu0 %465
    %v467 = vadd.f32 %v151, %v152
    %468 = vadd.xlane.f32.xlu0 %v467
    %v469 = vpop.xlane.xlu0 %468
    %v470 = vadd.f32 %v153, %v154
    %471 = vadd.xlane.f32.xlu0 %v470
    %v472 = vpop.xlane.xlu0 %471
    %v473 = vadd.f32 %v155, %v156
    %474 = vadd.xlane.f32.xlu0 %v473
    %v475 = vpop.xlane.xlu0 %474
    %v476 = vadd.f32 %v157, %v158
    %477 = vadd.xlane.f32.xlu0 %v476
    %v478 = vpop.xlane.xlu0 %477
    %v479 = vadd.f32 %v159, %v160
    %480 = vadd.xlane.f32.xlu0 %v479
    %v481 = vpop.xlane.xlu0 %480
    %v482 = vadd.f32 %v161, %v162
    %483 = vadd.xlane.f32.xlu0 %v482
    %v484 = vpop.xlane.xlu0 %483
    %v485 = vadd.f32 %v163, %v164
    %486 = vadd.xlane.f32.xlu0 %v485
    %v487 = vpop.xlane.xlu0 %486
    %v488 = vadd.f32 %v165, %v166
    %489 = vadd.xlane.f32.xlu0 %v488
    %v490 = vpop.xlane.xlu0 %489
    %v491 = vadd.f32 %v167, %v168
    %492 = vadd.xlane.f32.xlu0 %v491
    %v493 = vpop.xlane.xlu0 %492
    %v494 = vadd.f32 %v169, %v170
    %495 = vadd.xlane.f32.xlu0 %v494
    %v496 = vpop.xlane.xlu0 %495
    %v497 = vadd.f32 %v171, %v172
    %498 = vadd.xlane.f32.xlu0 %v497
    %v499 = vpop.xlane.xlu0 %498
    %v500 = vadd.f32 %v173, %v174
    %501 = vadd.xlane.f32.xlu0 %v500
    %v502 = vpop.xlane.xlu0 %501
    %v503 = vadd.f32 %v175, %v176
    %504 = vadd.xlane.f32.xlu0 %v503
    %v505 = vpop.xlane.xlu0 %504
    %v506 = vadd.f32 %v177, %v178
    %507 = vadd.xlane.f32.xlu0 %v506
    %v508 = vpop.xlane.xlu0 %507
    %v509 = vadd.f32 %v179, %v180
    %510 = vadd.xlane.f32.xlu0 %v509
    %v511 = vpop.xlane.xlu0 %510
    %v512 = vadd.f32 %v181, %v182
    %513 = vadd.xlane.f32.xlu0 %v512
    %v514 = vpop.xlane.xlu0 %513
    %v515 = vadd.f32 %v183, %v184
    %516 = vadd.xlane.f32.xlu0 %v515
    %v517 = vpop.xlane.xlu0 %516
    %v518 = vadd.f32 %v185, %v186
    %519 = vadd.xlane.f32.xlu0 %v518
    %v520 = vpop.xlane.xlu0 %519
    %v521 = vadd.f32 %v187, %v188
    %522 = vadd.xlane.f32.xlu0 %v521
    %v523 = vpop.xlane.xlu0 %522
    %v524 = vadd.f32 %v189, %v190
    %525 = vadd.xlane.f32.xlu0 %v524
    %v526 = vpop.xlane.xlu0 %525
    %v527 = vadd.f32 %v191, %v192
    %528 = vadd.xlane.f32.xlu0 %v527
    %v529 = vpop.xlane.xlu0 %528
    %v530 = vadd.f32 %v193, %v194
    %531 = vadd.xlane.f32.xlu0 %v530
    %v532 = vpop.xlane.xlu0 %531
    %v533 = vadd.f32 %v195, %v196
    %534 = vadd.xlane.f32.xlu0 %v533
    %v535 = vpop.xlane.xlu0 %534
    %v536 = vadd.f32 %v197, %v198
    %537 = vadd.xlane.f32.xlu0 %v536
    %v538 = vpop.xlane.xlu0 %537
    %v539 = vadd.f32 %v199, %v200
    %540 = vadd.xlane.f32.xlu0 %v539
    %v541 = vpop.xlane.xlu0 %540
    %v542 = vadd.f32 %v201, %v202
    %543 = vadd.xlane.f32.xlu0 %v542
    %v544 = vpop.xlane.xlu0 %543
    %v545 = vadd.f32 %v203, %v204
    %546 = vadd.xlane.f32.xlu0 %v545
    %v547 = vpop.xlane.xlu0 %546
    %v548 = vadd.f32 %v205, %v206
    %549 = vadd.xlane.f32.xlu0 %v548
    %v550 = vpop.xlane.xlu0 %549
    %v551 = vadd.f32 %v207, %v208
    %552 = vadd.xlane.f32.xlu0 %v551
    %v553 = vpop.xlane.xlu0 %552
    %v554 = vadd.f32 %v209, %v210
    %555 = vadd.xlane.f32.xlu0 %v554
    %v556 = vpop.xlane.xlu0 %555
    %v557 = vadd.f32 %v211, %v212
    %558 = vadd.xlane.f32.xlu0 %v557
    %v559 = vpop.xlane.xlu0 %558
    %v560 = vadd.f32 %v213, %v214
    %561 = vadd.xlane.f32.xlu0 %v560
    %v562 = vpop.xlane.xlu0 %561
    %v563 = vadd.f32 %v215, %v216
    %564 = vadd.xlane.f32.xlu0 %v563
    %v565 = vpop.xlane.xlu0 %564
    %v566 = vadd.f32 %v217, %v218
    %567 = vadd.xlane.f32.xlu0 %v566
    %v568 = vpop.xlane.xlu0 %567
    %v569 = vadd.f32 %v219, %v220
    %570 = vadd.xlane.f32.xlu0 %v569
    %v571 = vpop.xlane.xlu0 %570
    %v572 = vadd.f32 %v221, %v222
    %573 = vadd.xlane.f32.xlu0 %v572
    %v574 = vpop.xlane.xlu0 %573
    %v575 = vadd.f32 %v223, %v224
    %576 = vadd.xlane.f32.xlu0 %v575
    %v577 = vpop.xlane.xlu0 %576
    %v578 = vadd.f32 %v225, %v226
    %579 = vadd.xlane.f32.xlu0 %v578
    %v580 = vpop.xlane.xlu0 %579
    %v581 = vadd.f32 %v227, %v228
    %582 = vadd.xlane.f32.xlu0 %v581
    %v583 = vpop.xlane.xlu0 %582
    %v584 = vadd.f32 %v229, %v230
    %585 = vadd.xlane.f32.xlu0 %v584
    %v586 = vpop.xlane.xlu0 %585
    %v587 = vadd.f32 %v231, %v232
    %588 = vadd.xlane.f32.xlu0 %v587
    %v589 = vpop.xlane.xlu0 %588
    %v590 = vadd.f32 %v233, %v234
    %591 = vadd.xlane.f32.xlu0 %v590
    %v592 = vpop.xlane.xlu0 %591
    %v593 = vadd.f32 %v235, %v236
    %594 = vadd.xlane.f32.xlu0 %v593
    %v595 = vpop.xlane.xlu0 %594
    %v596 = vadd.f32 %v237, %v238
    %597 = vadd.xlane.f32.xlu0 %v596
    %v598 = vpop.xlane.xlu0 %597
    %v599 = vadd.f32 %v239, %v240
    %600 = vadd.xlane.f32.xlu0 %v599
    %v601 = vpop.xlane.xlu0 %600
    %v602 = vadd.f32 %v241, %v242
    %603 = vadd.xlane.f32.xlu0 %v602
    %v604 = vpop.xlane.xlu0 %603
    %v605 = vadd.f32 %v243, %v244
    %606 = vadd.xlane.f32.xlu0 %v605
    %v607 = vpop.xlane.xlu0 %606
    %v608 = vadd.f32 %v245, %v246
    %609 = vadd.xlane.f32.xlu0 %v608
    %v610 = vpop.xlane.xlu0 %609
    %v611 = vadd.f32 %v247, %v248
    %612 = vadd.xlane.f32.xlu0 %v611
    %v613 = vpop.xlane.xlu0 %612
    %v614 = vadd.f32 %v249, %v250
    %615 = vadd.xlane.f32.xlu0 %v614
    %v616 = vpop.xlane.xlu0 %615
    %v617 = vadd.f32 %v251, %v252
    %618 = vadd.xlane.f32.xlu0 %v617
    %v619 = vpop.xlane.xlu0 %618
    %v620 = vadd.f32 %v253, %v254
    %621 = vadd.xlane.f32.xlu0 %v620
    %v622 = vpop.xlane.xlu0 %621
    %v623 = vadd.f32 %v255, %v256
    %624 = vadd.xlane.f32.xlu0 %v623
    %v625 = vpop.xlane.xlu0 %624
    %v626 = vadd.f32 %v257, %v258
    %627 = vadd.xlane.f32.xlu0 %v626
    %v628 = vpop.xlane.xlu0 %627
    %v629 = vadd.f32 %v259, %v260
    %630 = vadd.xlane.f32.xlu0 %v629
    %v631 = vpop.xlane.xlu0 %630
    %v632 = vadd.f32 %v261, %v262
    %633 = vadd.xlane.f32.xlu0 %v632
    %v634 = vpop.xlane.xlu0 %633
    %v635 = vadd.f32 %v263, %v264
    %636 = vadd.xlane.f32.xlu0 %v635
    %v637 = vpop.xlane.xlu0 %636
    %v638 = vadd.f32 %v265, %v266
    %639 = vadd.xlane.f32.xlu0 %v638
    %v640 = vpop.xlane.xlu0 %639
    %v641 = vadd.f32 %v267, %v268
    %642 = vadd.xlane.f32.xlu0 %v641
    %v643 = vpop.xlane.xlu0 %642
    %v644 = vadd.f32 %v269, %v270
    %645 = vadd.xlane.f32.xlu0 %v644
    %v646 = vpop.xlane.xlu0 %645
    %v647 = vadd.f32 %v271, %v272
    %648 = vadd.xlane.f32.xlu0 %v647
    %v649 = vpop.xlane.xlu0 %648
    %v650 = vadd.f32 %v273, %v274
    %651 = vadd.xlane.f32.xlu0 %v650
    %v652 = vpop.xlane.xlu0 %651
    %v653 = vadd.f32 %v275, %v276
    %654 = vadd.xlane.f32.xlu0 %v653
    %v655 = vpop.xlane.xlu0 %654
    %v656 = vadd.f32 %v277, %v278
    %657 = vadd.xlane.f32.xlu0 %v656
    %v658 = vpop.xlane.xlu0 %657
    %v659 = vadd.f32 %v279, %v280
    %660 = vadd.xlane.f32.xlu0 %v659
    %v661 = vpop.xlane.xlu0 %660
    %v662 = vadd.f32 %v281, %v282
    %663 = vadd.xlane.f32.xlu0 %v662
    %v664 = vpop.xlane.xlu0 %663
    %v665 = vadd.f32 %v283, %v284
    %666 = vadd.xlane.f32.xlu0 %v665
    %v667 = vpop.xlane.xlu0 %666
    %v668 = vadd.f32 %v285, %v286
    %669 = vadd.xlane.f32.xlu0 %v668
    %v670 = vpop.xlane.xlu0 %669
    %v671 = vld [vmem:[%s1] sm:$0xff]
    %v672 = vld [vmem:[%s1 + $0x8] sm:$0xff]
    %v673 = vld [vmem:[%s1 + $0x10] sm:$0xff]
    %v674 = vld [vmem:[%s1 + $0x18] sm:$0xff]
    %v675 = vld [vmem:[%s1 + $0x20] sm:$0xff]
    %v676 = vld [vmem:[%s1 + $0x28] sm:$0xff]
    %v677 = vld [vmem:[%s1 + $0x30] sm:$0xff]
    %v678 = vld [vmem:[%s1 + $0x38] sm:$0xff]
    %v679 = vld [vmem:[%s1 + $0x40] sm:$0xff]
    %v680 = vld [vmem:[%s1 + $0x48] sm:$0xff]
    %v681 = vld [vmem:[%s1 + $0x50] sm:$0xff]
    %v682 = vld [vmem:[%s1 + $0x58] sm:$0xff]
    %v683 = vld [vmem:[%s1 + $0x60] sm:$0xff]
    %v684 = vld [vmem:[%s1 + $0x68] sm:$0xff]
    %v685 = vld [vmem:[%s1 + $0x70] sm:$0xff]
    %v686 = vld [vmem:[%s1 + $0x78] sm:$0xff]
    %v687 = vld [vmem:[%s1 + $0x80] sm:$0xff]
    %v688 = vld [vmem:[%s1 + $0x88] sm:$0xff]
    %v689 = vld [vmem:[%s1 + $0x90] sm:$0xff]
    %v690 = vld [vmem:[%s1 + $0x98] sm:$0xff]
    %v691 = vld [vmem:[%s1 + $0xa0] sm:$0xff]
    %v692 = vld [vmem:[%s1 + $0xa8] sm:$0xff]
    %v693 = vld [vmem:[%s1 + $0xb0] sm:$0xff]
    %v694 = vld [vmem:[%s1 + $0xb8] sm:$0xff]
    %v695 = vld [vmem:[%s1 + $0xc0] sm:$0xff]
    %v696 = vld [vmem:[%s1 + $0xc8] sm:$0xff]
    %v697 = vld [vmem:[%s1 + $0xd0] sm:$0xff]
    %v698 = vld [vmem:[%s1 + $0xd8] sm:$0xff]
    %v699 = vld [vmem:[%s1 + $0xe0] sm:$0xff]
    %v700 = vld [vmem:[%s1 + $0xe8] sm:$0xff]
    %v701 = vld [vmem:[%s1 + $0xf0] sm:$0xff]
    %v702 = vld [vmem:[%s1 + $0xf8] sm:$0xff]
    %v703 = vld [vmem:[%s1 + $0x100] sm:$0xff]
    %v704 = vld [vmem:[%s1 + $0x108] sm:$0xff]
    %v705 = vld [vmem:[%s1 + $0x110] sm:$0xff]
    %v706 = vld [vmem:[%s1 + $0x118] sm:$0xff]
    %v707 = vld [vmem:[%s1 + $0x120] sm:$0xff]
    %v708 = vld [vmem:[%s1 + $0x128] sm:$0xff]
    %v709 = vld [vmem:[%s1 + $0x130] sm:$0xff]
    %v710 = vld [vmem:[%s1 + $0x138] sm:$0xff]
    %v711 = vld [vmem:[%s1 + $0x140] sm:$0xff]
    %v712 = vld [vmem:[%s1 + $0x148] sm:$0xff]
    %v713 = vld [vmem:[%s1 + $0x150] sm:$0xff]
    %v714 = vld [vmem:[%s1 + $0x158] sm:$0xff]
    %v715 = vld [vmem:[%s1 + $0x160] sm:$0xff]
    %v716 = vld [vmem:[%s1 + $0x168] sm:$0xff]
    %v717 = vld [vmem:[%s1 + $0x170] sm:$0xff]
    %v718 = vld [vmem:[%s1 + $0x178] sm:$0xff]
    %v719 = vld [vmem:[%s1 + $0x180] sm:$0xff]
    %v720 = vld [vmem:[%s1 + $0x188] sm:$0xff]
    %v721 = vld [vmem:[%s1 + $0x190] sm:$0xff]
    %v722 = vld [vmem:[%s1 + $0x198] sm:$0xff]
    %v723 = vld [vmem:[%s1 + $0x1a0] sm:$0xff]
    %v724 = vld [vmem:[%s1 + $0x1a8] sm:$0xff]
    %v725 = vld [vmem:[%s1 + $0x1b0] sm:$0xff]
    %v726 = vld [vmem:[%s1 + $0x1b8] sm:$0xff]
    %v727 = vld [vmem:[%s1 + $0x1c0] sm:$0xff]
    %v728 = vld [vmem:[%s1 + $0x1c8] sm:$0xff]
    %v729 = vld [vmem:[%s1 + $0x1d0] sm:$0xff]
    %v730 = vld [vmem:[%s1 + $0x1d8] sm:$0xff]
    %v731 = vld [vmem:[%s1 + $0x1e0] sm:$0xff]
    %v732 = vld [vmem:[%s1 + $0x1e8] sm:$0xff]
    %v733 = vld [vmem:[%s1 + $0x1f0] sm:$0xff]
    %v734 = vld [vmem:[%s1 + $0x1f8] sm:$0xff]
    %v863 = vlaneseq
    %v864 = vand.u32 %v863, 127
    %v865 = vperm.slane %v289, %v864
    %v866 = vadd.s32 %v864, 4294967288
    %v867 = vperm.slane %v292, %v866
    %vm868 = vcmask 130112
    %v869 = vsel %vm868, %v867, %v865
    %v870 = vadd.s32 %v864, 4294967280
    %v871 = vperm.slane %v295, %v870
    %vm872 = vcmask 195712
    %v873 = vsel %vm872, %v871, %v869
    %v874 = vadd.s32 %v864, 4294967272
    %v875 = vperm.slane %v298, %v874
    %vm876 = vcmask 261312
    %v877 = vsel %vm876, %v875, %v873
    %v878 = vadd.s32 %v864, 4294967264
    %v879 = vperm.slane %v301, %v878
    %vm880 = vcmask 326912
    %v881 = vsel %vm880, %v879, %v877
    %v882 = vadd.s32 %v864, 4294967256
    %v883 = vperm.slane %v304, %v882
    %vm884 = vcmask 392512
    %v885 = vsel %vm884, %v883, %v881
    %v886 = vadd.s32 %v864, 4294967248
    %v887 = vperm.slane %v307, %v886
    %vm888 = vcmask 458112
    %v889 = vsel %vm888, %v887, %v885
    %v890 = vadd.s32 %v864, 4294967240
    %v891 = vperm.slane %v310, %v890
    %vm892 = vcmask 523712
    %v893 = vsel %vm892, %v891, %v889
    %v894 = vadd.s32 %v864, 4294967232
    %v895 = vperm.slane %v313, %v894
    %vm896 = vcmask 589312
    %v897 = vsel %vm896, %v895, %v893
    %v898 = vadd.s32 %v864, 4294967224
    %v899 = vperm.slane %v316, %v898
    %vm900 = vcmask 654912
    %v901 = vsel %vm900, %v899, %v897
    %v902 = vadd.s32 %v864, 4294967216
    %v903 = vperm.slane %v319, %v902
    %vm904 = vcmask 720512
    %v905 = vsel %vm904, %v903, %v901
    %v906 = vadd.s32 %v864, 4294967208
    %v907 = vperm.slane %v322, %v906
    %vm908 = vcmask 786112
    %v909 = vsel %vm908, %v907, %v905
    %v910 = vadd.s32 %v864, 4294967200
    %v911 = vperm.slane %v325, %v910
    %vm912 = vcmask 851712
    %v913 = vsel %vm912, %v911, %v909
    %v914 = vadd.s32 %v864, 4294967192
    %v915 = vperm.slane %v328, %v914
    %vm916 = vcmask 917312
    %v917 = vsel %vm916, %v915, %v913
    %v918 = vadd.s32 %v864, 4294967184
    %v919 = vperm.slane %v331, %v918
    %vm920 = vcmask 982912
    %v921 = vsel %vm920, %v919, %v917
    %v922 = vadd.s32 %v864, 4294967176
    %v923 = vperm.slane %v334, %v922
    %vm924 = vcmask 1048512
    %v925 = vsel %vm924, %v923, %v921
    %v926 = vperm.slane %v337, %v864
    %v927 = vperm.slane %v340, %v866
    %v928 = vsel %vm868, %v927, %v926
    %v929 = vperm.slane %v343, %v870
    %v930 = vsel %vm872, %v929, %v928
    %v931 = vperm.slane %v346, %v874
    %v932 = vsel %vm876, %v931, %v930
    %v933 = vperm.slane %v349, %v878
    %v934 = vsel %vm880, %v933, %v932
    %v935 = vperm.slane %v352, %v882
    %v936 = vsel %vm884, %v935, %v934
    %v937 = vperm.slane %v355, %v886
    %v938 = vsel %vm888, %v937, %v936
    %v939 = vperm.slane %v358, %v890
    %v940 = vsel %vm892, %v939, %v938
    %v941 = vperm.slane %v361, %v894
    %v942 = vsel %vm896, %v941, %v940
    %v943 = vperm.slane %v364, %v898
    %v944 = vsel %vm900, %v943, %v942
    %v945 = vperm.slane %v367, %v902
    %v946 = vsel %vm904, %v945, %v944
    %v947 = vperm.slane %v370, %v906
    %v948 = vsel %vm908, %v947, %v946
    %v949 = vperm.slane %v373, %v910
    %v950 = vsel %vm912, %v949, %v948
    %v951 = vperm.slane %v376, %v914
    %v952 = vsel %vm916, %v951, %v950
    %v953 = vperm.slane %v379, %v918
    %v954 = vsel %vm920, %v953, %v952
    %v955 = vperm.slane %v382, %v922
    %v956 = vsel %vm924, %v955, %v954
    %v957 = vperm.slane %v385, %v864
    %v958 = vperm.slane %v388, %v866
    %v959 = vsel %vm868, %v958, %v957
    %v960 = vperm.slane %v391, %v870
    %v961 = vsel %vm872, %v960, %v959
    %v962 = vperm.slane %v394, %v874
    %v963 = vsel %vm876, %v962, %v961
    %v964 = vperm.slane %v397, %v878
    %v965 = vsel %vm880, %v964, %v963
    %v966 = vperm.slane %v400, %v882
    %v967 = vsel %vm884, %v966, %v965
    %v968 = vperm.slane %v403, %v886
    %v969 = vsel %vm888, %v968, %v967
    %v970 = vperm.slane %v406, %v890
    %v971 = vsel %vm892, %v970, %v969
    %v972 = vperm.slane %v409, %v894
    %v973 = vsel %vm896, %v972, %v971
    %v974 = vperm.slane %v412, %v898
    %v975 = vsel %vm900, %v974, %v973
    %v976 = vperm.slane %v415, %v902
    %v977 = vsel %vm904, %v976, %v975
    %v978 = vperm.slane %v418, %v906
    %v979 = vsel %vm908, %v978, %v977
    %v980 = vperm.slane %v421, %v910
    %v981 = vsel %vm912, %v980, %v979
    %v982 = vperm.slane %v424, %v914
    %v983 = vsel %vm916, %v982, %v981
    %v984 = vperm.slane %v427, %v918
    %v985 = vsel %vm920, %v984, %v983
    %v986 = vperm.slane %v430, %v922
    %v987 = vsel %vm924, %v986, %v985
    %v988 = vperm.slane %v433, %v864
    %v989 = vperm.slane %v436, %v866
    %v990 = vsel %vm868, %v989, %v988
    %v991 = vperm.slane %v439, %v870
    %v992 = vsel %vm872, %v991, %v990
    %v993 = vperm.slane %v442, %v874
    %v994 = vsel %vm876, %v993, %v992
    %v995 = vperm.slane %v445, %v878
    %v996 = vsel %vm880, %v995, %v994
    %v997 = vperm.slane %v448, %v882
    %v998 = vsel %vm884, %v997, %v996
    %v999 = vperm.slane %v451, %v886
    %v1000 = vsel %vm888, %v999, %v998
    %v1001 = vperm.slane %v454, %v890
    %v1002 = vsel %vm892, %v1001, %v1000
    %v1003 = vperm.slane %v457, %v894
    %v1004 = vsel %vm896, %v1003, %v1002
    %v1005 = vperm.slane %v460, %v898
    %v1006 = vsel %vm900, %v1005, %v1004
    %v1007 = vperm.slane %v463, %v902
    %v1008 = vsel %vm904, %v1007, %v1006
    %v1009 = vperm.slane %v466, %v906
    %v1010 = vsel %vm908, %v1009, %v1008
    %v1011 = vperm.slane %v469, %v910
    %v1012 = vsel %vm912, %v1011, %v1010
    %v1013 = vperm.slane %v472, %v914
    %v1014 = vsel %vm916, %v1013, %v1012
    %v1015 = vperm.slane %v475, %v918
    %v1016 = vsel %vm920, %v1015, %v1014
    %v1017 = vperm.slane %v478, %v922
    %v1018 = vsel %vm924, %v1017, %v1016
    %v1019 = vperm.slane %v481, %v864
    %v1020 = vperm.slane %v484, %v866
    %v1021 = vsel %vm868, %v1020, %v1019
    %v1022 = vperm.slane %v487, %v870
    %v1023 = vsel %vm872, %v1022, %v1021
    %v1024 = vperm.slane %v490, %v874
    %v1025 = vsel %vm876, %v1024, %v1023
    %v1026 = vperm.slane %v493, %v878
    %v1027 = vsel %vm880, %v1026, %v1025
    %v1028 = vperm.slane %v496, %v882
    %v1029 = vsel %vm884, %v1028, %v1027
    %v1030 = vperm.slane %v499, %v886
    %v1031 = vsel %vm888, %v1030, %v1029
    %v1032 = vperm.slane %v502, %v890
    %v1033 = vsel %vm892, %v1032, %v1031
    %v1034 = vperm.slane %v505, %v894
    %v1035 = vsel %vm896, %v1034, %v1033
    %v1036 = vperm.slane %v508, %v898
    %v1037 = vsel %vm900, %v1036, %v1035
    %v1038 = vperm.slane %v511, %v902
    %v1039 = vsel %vm904, %v1038, %v1037
    %v1040 = vperm.slane %v514, %v906
    %v1041 = vsel %vm908, %v1040, %v1039
    %v1042 = vperm.slane %v517, %v910
    %v1043 = vsel %vm912, %v1042, %v1041
    %v1044 = vperm.slane %v520, %v914
    %v1045 = vsel %vm916, %v1044, %v1043
    %v1046 = vperm.slane %v523, %v918
    %v1047 = vsel %vm920, %v1046, %v1045
    %v1048 = vperm.slane %v526, %v922
    %v1049 = vsel %vm924, %v1048, %v1047
    %v1050 = vperm.slane %v529, %v864
    %v1051 = vperm.slane %v532, %v866
    %v1052 = vsel %vm868, %v1051, %v1050
    %v1053 = vperm.slane %v535, %v870
    %v1054 = vsel %vm872, %v1053, %v1052
    %v1055 = vperm.slane %v538, %v874
    %v1056 = vsel %vm876, %v1055, %v1054
    %v1057 = vperm.slane %v541, %v878
    %v1058 = vsel %vm880, %v1057, %v1056
    %v1059 = vperm.slane %v544, %v882
    %v1060 = vsel %vm884, %v1059, %v1058
    %v1061 = vperm.slane %v547, %v886
    %v1062 = vsel %vm888, %v1061, %v1060
    %v1063 = vperm.slane %v550, %v890
    %v1064 = vsel %vm892, %v1063, %v1062
    %v1065 = vperm.slane %v553, %v894
    %v1066 = vsel %vm896, %v1065, %v1064
    %v1067 = vperm.slane %v556, %v898
    %v1068 = vsel %vm900, %v1067, %v1066
    %v1069 = vperm.slane %v559, %v902
    %v1070 = vsel %vm904, %v1069, %v1068
    %v1071 = vperm.slane %v562, %v906
    %v1072 = vsel %vm908, %v1071, %v1070
    %v1073 = vperm.slane %v565, %v910
    %v1074 = vsel %vm912, %v1073, %v1072
    %v1075 = vperm.slane %v568, %v914
    %v1076 = vsel %vm916, %v1075, %v1074
    %v1077 = vperm.slane %v571, %v918
    %v1078 = vsel %vm920, %v1077, %v1076
    %v1079 = vperm.slane %v574, %v922
    %v1080 = vsel %vm924, %v1079, %v1078
    %v1081 = vperm.slane %v577, %v864
    %v1082 = vperm.slane %v580, %v866
    %v1083 = vsel %vm868, %v1082, %v1081
    %v1084 = vperm.slane %v583, %v870
    %v1085 = vsel %vm872, %v1084, %v1083
    %v1086 = vperm.slane %v586, %v874
    %v1087 = vsel %vm876, %v1086, %v1085
    %v1088 = vperm.slane %v589, %v878
    %v1089 = vsel %vm880, %v1088, %v1087
    %v1090 = vperm.slane %v592, %v882
    %v1091 = vsel %vm884, %v1090, %v1089
    %v1092 = vperm.slane %v595, %v886
    %v1093 = vsel %vm888, %v1092, %v1091
    %v1094 = vperm.slane %v598, %v890
    %v1095 = vsel %vm892, %v1094, %v1093
    %v1096 = vperm.slane %v601, %v894
    %v1097 = vsel %vm896, %v1096, %v1095
    %v1098 = vperm.slane %v604, %v898
    %v1099 = vsel %vm900, %v1098, %v1097
    %v1100 = vperm.slane %v607, %v902
    %v1101 = vsel %vm904, %v1100, %v1099
    %v1102 = vperm.slane %v610, %v906
    %v1103 = vsel %vm908, %v1102, %v1101
    %v1104 = vperm.slane %v613, %v910
    %v1105 = vsel %vm912, %v1104, %v1103
    %v1106 = vperm.slane %v616, %v914
    %v1107 = vsel %vm916, %v1106, %v1105
    %v1108 = vperm.slane %v619, %v918
    %v1109 = vsel %vm920, %v1108, %v1107
    %v1110 = vperm.slane %v622, %v922
    %v1111 = vsel %vm924, %v1110, %v1109
    %v1112 = vperm.slane %v625, %v864
    %v1113 = vperm.slane %v628, %v866
    %v1114 = vsel %vm868, %v1113, %v1112
    %v1115 = vperm.slane %v631, %v870
    %v1116 = vsel %vm872, %v1115, %v1114
    %v1117 = vperm.slane %v634, %v874
    %v1118 = vsel %vm876, %v1117, %v1116
    %v1119 = vperm.slane %v637, %v878
    %v1120 = vsel %vm880, %v1119, %v1118
    %v1121 = vperm.slane %v640, %v882
    %v1122 = vsel %vm884, %v1121, %v1120
    %v1123 = vperm.slane %v643, %v886
    %v1124 = vsel %vm888, %v1123, %v1122
    %v1125 = vperm.slane %v646, %v890
    %v1126 = vsel %vm892, %v1125, %v1124
    %v1127 = vperm.slane %v649, %v894
    %v1128 = vsel %vm896, %v1127, %v1126
    %v1129 = vperm.slane %v652, %v898
    %v1130 = vsel %vm900, %v1129, %v1128
    %v1131 = vperm.slane %v655, %v902
    %v1132 = vsel %vm904, %v1131, %v1130
    %v1133 = vperm.slane %v658, %v906
    %v1134 = vsel %vm908, %v1133, %v1132
    %v1135 = vperm.slane %v661, %v910
    %v1136 = vsel %vm912, %v1135, %v1134
    %v1137 = vperm.slane %v664, %v914
    %v1138 = vsel %vm916, %v1137, %v1136
    %v1139 = vperm.slane %v667, %v918
    %v1140 = vsel %vm920, %v1139, %v1138
    %v1141 = vperm.slane %v670, %v922
    %v1142 = vsel %vm924, %v1141, %v1140
    %vm1143 = vcmask 1041409
    %v1144 = vsel %vm1143, %v1049, %v925
    %v1145 = vsel %vm1143, %v1080, %v956
    %v1146 = vsel %vm1143, %v1111, %v987
    %v1147 = vsel %vm1143, %v1142, %v1018
    %1152 = vmatpush.msra.mxu0 %v686
    %1153 = vmatpush.msra.mxu0 %v685
    %1154 = vmatpush.msra.mxu0 %v684
    %1155 = vmatpush.msra.mxu0 %v683
    %1156 = vmatpush.msra.mxu0 %v682
    %1157 = vmatpush.msra.mxu0 %v681
    %1158 = vmatpush.msra.mxu0 %v680
    %1159 = vmatpush.msra.mxu0 %v679
    %1160 = vmatpush.msra.mxu0 %v678
    %1161 = vmatpush.msra.mxu0 %v677
    %1162 = vmatpush.msra.mxu0 %v676
    %1163 = vmatpush.msra.mxu0 %v675
    %1164 = vmatpush.msra.mxu0 %v674
    %1165 = vmatpush.msra.mxu0 %v673
    %1166 = vmatpush.msra.mxu0 %v672
    %1167 = vmatpush.msra.mxu0 %v671
    %1168 = vmatmul.f32.gmra.mxu0 %v1144
    %v1169 = vpop.f32.mrf.mxu0
    %v1170 = vadd.f32 0.0, %v1169
    %1171 = vdwg.mxu0
    %1172 = vmatpush.msra.mxu0 %v702
    %1173 = vmatpush.msra.mxu0 %v701
    %1174 = vmatpush.msra.mxu0 %v700
    %1175 = vmatpush.msra.mxu0 %v699
    %1176 = vmatpush.msra.mxu0 %v698
    %1177 = vmatpush.msra.mxu0 %v697
    %1178 = vmatpush.msra.mxu0 %v696
    %1179 = vmatpush.msra.mxu0 %v695
    %1180 = vmatpush.msra.mxu0 %v694
    %1181 = vmatpush.msra.mxu0 %v693
    %1182 = vmatpush.msra.mxu0 %v692
    %1183 = vmatpush.msra.mxu0 %v691
    %1184 = vmatpush.msra.mxu0 %v690
    %1185 = vmatpush.msra.mxu0 %v689
    %1186 = vmatpush.msra.mxu0 %v688
    %1187 = vmatpush.msra.mxu0 %v687
    %1188 = vmatmul.f32.gmra.mxu0 %v1145
    %v1189 = vpop.f32.mrf.mxu0
    %v1190 = vadd.f32 %v1170, %v1189
    %1191 = vdwg.mxu0
    %1192 = vmatpush.msra.mxu0 %v718
    %1193 = vmatpush.msra.mxu0 %v717
    %1194 = vmatpush.msra.mxu0 %v716
    %1195 = vmatpush.msra.mxu0 %v715
    %1196 = vmatpush.msra.mxu0 %v714
    %1197 = vmatpush.msra.mxu0 %v713
    %1198 = vmatpush.msra.mxu0 %v712
    %1199 = vmatpush.msra.mxu0 %v711
    %1200 = vmatpush.msra.mxu0 %v710
    %1201 = vmatpush.msra.mxu0 %v709
    %1202 = vmatpush.msra.mxu0 %v708
    %1203 = vmatpush.msra.mxu0 %v707
    %1204 = vmatpush.msra.mxu0 %v706
    %1205 = vmatpush.msra.mxu0 %v705
    %1206 = vmatpush.msra.mxu0 %v704
    %1207 = vmatpush.msra.mxu0 %v703
    %1208 = vmatmul.f32.gmra.mxu0 %v1146
    %v1209 = vpop.f32.mrf.mxu0
    %v1210 = vadd.f32 %v1190, %v1209
    %1211 = vdwg.mxu0
    %1212 = vmatpush.msra.mxu0 %v734
    %1213 = vmatpush.msra.mxu0 %v733
    %1214 = vmatpush.msra.mxu0 %v732
    %1215 = vmatpush.msra.mxu0 %v731
    %1216 = vmatpush.msra.mxu0 %v730
    %1217 = vmatpush.msra.mxu0 %v729
    %1218 = vmatpush.msra.mxu0 %v728
    %1219 = vmatpush.msra.mxu0 %v727
    %1220 = vmatpush.msra.mxu0 %v726
    %1221 = vmatpush.msra.mxu0 %v725
    %1222 = vmatpush.msra.mxu0 %v724
    %1223 = vmatpush.msra.mxu0 %v723
    %1224 = vmatpush.msra.mxu0 %v722
    %1225 = vmatpush.msra.mxu0 %v721
    %1226 = vmatpush.msra.mxu0 %v720
    %1227 = vmatpush.msra.mxu0 %v719
    %1228 = vmatmul.f32.gmra.mxu0 %v1147
    %v1229 = vpop.f32.mrf.mxu0
    %v1230 = vadd.f32 %v1210, %v1229
    %1231 = vdwg.mxu0
    %v1232 = vmul.f32 %v1230, 0.00390625
    %v1233 = vld [vmem:[%s2] sm:$0x1]
    %v1235 = vperm.slane %v1233, 0
    %v1237 = vadd.f32 %v1232, %v1235
    %vm1238 = vcmask 517120
    %1239 = vst.msk [vmem:[#allocation5] sm:$0x3] %vm1238, %v1237
    // Predicated region
    $region18: #{tpu_custom_call.1} parent=1 // pred_check
      _
    $region19: #{tpu_custom_call.1} parent=1 // pred_check_branch
      %1241 = sbr.rel (0) target = $region21
    $region20: #{tpu_custom_call.1} parent=1 // pred_region
      %1243 = vsyncadd [#allocation4], 0
      %s1245 = sshll.u32 [#allocation5], 4
      %s1246 = int_to_ptr.vmem [resolvable:$true] %s1245
      %s1247 = sshll.u32 %s3, 4
      %s1248 = int_to_ptr.hbm [resolvable:$true] %s1247
      %1250 = dma.vmem_to_hbm [thread:$0]  %s1246, 32, %s1248, [#allocation4]
    $region21: #{tpu_custom_call.1} parent=1 // pred_fallthru
      _
    // Predicated region
    $region22: #{tpu_custom_call.1} parent=1 // pred_check
      _
    $region23: #{tpu_custom_call.1} parent=1 // pred_check_branch
      %1252 = sbr.rel (0) target = $region25
    $region24: #{tpu_custom_call.1} parent=1 // pred_region
      %1254 = dma.done [#allocation4], 32
    $region25: #{tpu_custom_call.1} parent=1 // pred_fallthru
      _
    %1255 = vsyncpa [#allocation3], 1
    %1256 = vsyncpa [#allocation4], 1

</llo_original>
